<compile_context>
chip_gen: v7x
topology: tpu7x:2x2x1
jax: 0.10.0
libtpu: 0.0.40
codegen_flags: <defaults>
</compile_context>

<pallas_src>
import functools
import numpy as np

import jax
import jax.numpy as jnp
from jax.experimental import pallas as pl
from jax.experimental.pallas import tpu as pltpu


def _tpu_budgets():
    """Per-generation (streamed bytes per grid step, scoped-VMEM limit)."""
    try:
        vmem_cap = pltpu.get_tpu_info().vmem_capacity_bytes
    except Exception:
        vmem_cap = 64 * 1024 * 1024
    if vmem_cap >= 100 * 1024 * 1024:          # v5e / v6e: 128 MiB physical VMEM
        return 8 << 20, 64 << 20
    return 6 << 20, 44 << 20                   # v7x: 64 MiB physical VMEM


def _dice_sums_kernel(x_ref, g_ref, o_ref, acc_ref, *, activation, S, tR,
                      n_inner, n_cls, c_off, needs_mask, full_tiles):
    # x_ref: (1, C, tR, 128) logits (native dtype)
    # g_ref: (1, Cg, tR, 128) ground truth (native dtype)
    # o_ref: (1, 1, 3, C, 128) resident per-(n, outer) output: [inter, pd, gt] lane-partials
    # acc_ref: VMEM (3, C, 128) f32 accumulator
    si = pl.program_id(2)
    tile_idx = pl.program_id(1) * n_inner + si

    @pl.when(si == 0)
    def _():
        acc_ref[...] = jnp.zeros_like(acc_ref)

    x = x_ref[0].astype(jnp.float32)                       # (C, tR, 128) dense slabs
    if c_off == 0 and g_ref.shape[1] == n_cls:
        g = g_ref[0].astype(jnp.float32)
    else:
        # Channel axis is a major dim in this layout -> aligned slice, no sublane relayout.
        g = g_ref[0, c_off:c_off + n_cls].astype(jnp.float32)

    if activation == "softmax":
        m = jnp.max(x, axis=0, keepdims=True)              # elementwise across C slabs
        e = jnp.exp(x - m)
        inv = pl.reciprocal(jnp.sum(e, axis=0, keepdims=True), approx=True)  # EUP
        p = e * inv
    else:
        # sigmoid(x) = 0.5*(tanh(x/2)+1): EUP tanh, numerically stable, no VALU divide.
        p = 0.5 * (jnp.tanh(0.5 * x) + 1.0)

    def _accumulate(pv, gv):
        acc_ref[0] += jnp.sum(pv * gv, axis=1)             # (C, 128) lane-partials
        acc_ref[1] += jnp.sum(pv * pv, axis=1)
        acc_ref[2] += jnp.sum(gv * gv, axis=1)

    if needs_mask:
        @pl.when(tile_idx < full_tiles)                    # fully in-bounds tiles: no mask cost
        def _():
            _accumulate(p, g)

        @pl.when(tile_idx >= full_tiles)                   # tail / grid-padded phantom tiles
        def _():
            row = jax.lax.broadcasted_iota(jnp.int32, p.shape, 1)
            lane = jax.lax.broadcasted_iota(jnp.int32, p.shape, 2)
            valid = (tile_idx * tR + row) * 128 + lane < S
            _accumulate(jnp.where(valid, p, 0.0), jnp.where(valid, g, 0.0))
    else:
        _accumulate(p, g)

    @pl.when(si == pl.num_programs(2) - 1)
    def _():
        o_ref[...] = acc_ref[...][None, None]


def _dice_partial_sums(x, g, activation, c_off, tile_rows=None):
    """x: (N, C, S), g: (N, Cg, S) -> (N, n_outer, 3, C, 128) f32 lane-partials.

    Columns along axis 2 are [inter, pd_area, gt_area]; caller sums axes (1, 4).
    """
    N, C, S = x.shape
    Ng, Cg, Sg = g.shape
    assert Ng == N and Sg == S and Cg >= c_off + C, (x.shape, g.shape, c_off)

    # Lane-dense layout: spatial dim -> (rows, 128) so every channel fills whole vregs.
    S_pad = pl.cdiv(S, 128) * 128
    if S_pad != S:
        # Uncommon for volumetric crops (S usually a multiple of 128); costs one pad copy.
        x = jnp.pad(x, ((0, 0), (0, 0), (0, S_pad - S)))
        g = jnp.pad(g, ((0, 0), (0, 0), (0, S_pad - S)))
    R = S_pad // 128
    x4 = x.reshape(N, C, R, 128)
    g4 = g.reshape(N, Cg, R, 128)
    # TODO(synk): if gt is guaranteed one-hot, stream int labels and rebuild the one-hot
    # in-kernel (and drop the unused sigmoid-path gt channel) to roughly halve HBM traffic;
    # kept dense to preserve soft-label semantics.

    stream_bytes, vmem_limit = _tpu_budgets()
    bytes_per_row = 128 * (C * x.dtype.itemsize + Cg * g.dtype.itemsize)
    if tile_rows is None:
        tR = max(8, (stream_bytes // bytes_per_row) // 8 * 8)
    else:
        tR = tile_rows
    tR = min(tR, R)                    # equals full dim R when R is tiny / not 8-aligned
    num_tiles = pl.cdiv(R, tR)
    n_outer = min(2, num_tiles)        # guaranteed spatial split for v7x's 2 TensorCores
    n_inner = pl.cdiv(num_tiles, n_outer)
    full_tiles = S // (tR * 128)       # grid steps guaranteed fully in-bounds (unmasked)
    needs_mask = (n_outer * n_inner * tR * 128 != S)

    kernel = functools.partial(
        _dice_sums_kernel, activation=activation, S=S, tR=tR, n_inner=n_inner,
        n_cls=C, c_off=c_off, needs_mask=needs_mask, full_tiles=full_tiles)

    def row_block(so, si):
        # Clamp so padded grid steps never DMA a fully out-of-bounds block.
        return jnp.minimum(so * n_inner + si, num_tiles - 1)

    return pl.pallas_call(
        kernel,
        out_shape=jax.ShapeDtypeStruct((N, n_outer, 3, C, 128), jnp.float32),
        grid_spec=pltpu.PrefetchScalarGridSpec(
            num_scalar_prefetch=0,
            grid=(N, n_outer, n_inner),
            in_specs=[
                pl.BlockSpec((1, C, tR, 128),
                             lambda n, so, si: (n, 0, row_block(so, si), 0)),
                pl.BlockSpec((1, Cg, tR, 128),
                             lambda n, so, si: (n, 0, row_block(so, si), 0)),
            ],
            out_specs=pl.BlockSpec((1, 1, 3, C, 128),
                                   lambda n, so, si: (n, so, 0, 0, 0)),
            scratch_shapes=[pltpu.VMEM((3, C, 128), jnp.float32)],
        ),
        compiler_params=pltpu.CompilerParams(
            dimension_semantics=("parallel", "parallel", "arbitrary"),
            vmem_limit_bytes=vmem_limit),
    )(x4, g4)


def _pred_kernel(x_ref, o_ref, *, activation):
    # Inference path (gt is None): hard predictions straight from logits (mem-bound).
    x = x_ref[0]                                           # (C, tS), native dtype
    if activation == "softmax":
        # Matches torch `pds == max(pds, dim=1)` exactly (including ties): softmax is
        # strictly monotonic with a shared per-voxel denominator.
        pred = x == jnp.max(x, axis=0, keepdims=True)
    else:
        pred = x >= 0                                      # sigmoid(x) >= 0.5  <=>  x >= 0
    o_ref[...] = pred[None].astype(o_ref.dtype)


def _predict(x, activation):
    # x: (N, C, S) -> hard predictions (N, C, S) in x.dtype (0/1 exact in any float dtype).
    # TODO(synk): emit uint8 if downstream accepts it (halves pred-path HBM write traffic).
    N, C, S = x.shape
    stream_bytes, vmem_limit = _tpu_budgets()
    bytes_per_voxel = C * 2 * x.dtype.itemsize             # input + same-dtype output
    tS = max(512, (stream_bytes // bytes_per_voxel) // 128 * 128)
    tS = min(tS, pl.cdiv(S, 128) * 128)
    num_tiles = pl.cdiv(S, tS)
    kernel = functools.partial(_pred_kernel, activation=activation)
    return pl.pallas_call(
        kernel,
        out_shape=jax.ShapeDtypeStruct((N, C, S), x.dtype),
        grid_spec=pltpu.PrefetchScalarGridSpec(
            num_scalar_prefetch=0,
            grid=(N, num_tiles),
            in_specs=[pl.BlockSpec((1, C, tS), lambda n, s: (n, 0, s))],
            out_specs=pl.BlockSpec((1, C, tS), lambda n, s: (n, 0, s)),
        ),
        compiler_params=pltpu.CompilerParams(
            dimension_semantics=("parallel", "parallel"),
            vmem_limit_bytes=vmem_limit),
    )(x)


class Cfg:
    # No learned parameters in LossAPI; cfg fully determines behaviour.
    loss = "dice_soft"       # 'dice_soft' -> softmax dice, 'dice_sig' -> sigmoid dice
    dice_scale = 1.0
    bce_scale = 1.0


class LossAPI:
    """JAX/Pallas port of the PyTorch LossAPI module."""

    def __init__(self, cfg):
        assert cfg.loss in ("dice_soft", "dice_sig")
        self.loss_name = cfg.loss
        self.weights = [cfg.dice_scale, cfg.bce_scale]

    def __call__(self, out, gt=None):
        activation = "softmax" if self.loss_name == "dice_soft" else "sigmoid"
        N, C = out.shape[0], out.shape[1]
        S = int(np.prod(out.shape[2:]))
        x = out.reshape(N, C, S)             # native dtype; no f32 upcast copy in HBM

        if gt is None:
            preds = _predict(x, activation)
            return preds.reshape(out.shape)

        Cg = gt.shape[1]
        c_off = 1 if activation == "sigmoid" else 0   # dice_loss_sigmoid pairs pd[:,i] with gt[:,i+1]
        assert Cg >= C + c_off, (Cg, C, c_off)
        g = gt.reshape(N, Cg, S)             # gt streamed in native dtype; offset applied in-kernel

        partials = _dice_partial_sums(x, g, activation, c_off)  # (N, n_outer, 3, C, 128)
        sums = partials.sum(axis=(1, 4))                        # (N, 3, C)
        inter, pd_area, gt_area = sums[:, 0], sums[:, 1], sums[:, 2]
        dice = (2.0 * inter + 1.0) / (pd_area + gt_area + 1.0)  # (N, C)
        dice = jnp.where(jnp.isnan(dice), 1.0, dice)            # dice[dice != dice] = 1
        dice_per_class = 1.0 - jnp.mean(dice, axis=0)           # (C,)
        total_dice = jnp.sum(dice_per_class)
        total = (self.weights[0] * total_dice).astype(out.dtype)

        # jnp 0-d scalars instead of float(): avoids per-entry device->host syncs.
        res = {f"dice_c{i}": dice_per_class[i] for i in range(C)}
        res["dice"] = total_dice
        res["all"] = total
        return res, total


if __name__ == "__main__":
    key = jax.random.PRNGKey(0)
    k1, k2, k3, k4 = jax.random.split(key, 4)

    # Small 3-D segmentation shapes; S = 4*8*7 = 224 (non-128-multiple -> pad + tail mask).
    N, C, D, H, W = 2, 4, 4, 8, 7
    out = jax.random.normal(k1, (N, C, D, H, W), dtype=jnp.float32)
    labels = jax.random.randint(k2, (N, D, H, W), 0, C)
    gt = jax.nn.one_hot(labels, C, axis=1, dtype=jnp.float32)    # (N, C, D, H, W)

    cfg = Cfg()
    loss_api = LossAPI(cfg)

    # ---- training path (softmax dice) ----
    res, total = loss_api(out, gt)
    total = jax.block_until_ready(total)

    p = jax.nn.softmax(out, axis=1).reshape(N, C, -1)
    gf = gt.reshape(N, C, -1)
    inter = jnp.sum(p * gf, axis=2)
    dice_ref = (2 * inter + 1) / (jnp.sum(p * p, 2) + jnp.sum(gf * gf, 2) + 1)
    total_ref = cfg.dice_scale * jnp.sum(1.0 - jnp.mean(dice_ref, axis=0))
    # approx-EUP reciprocal in the softmax denominator -> slightly looser tolerance
    assert abs(float(total) - float(total_ref)) < 2e-2, (float(total), float(total_ref))

    # ---- training path (sigmoid dice; gt has C+1 channels, classes shifted by 1) ----
    cfg_sig = Cfg()
    cfg_sig.loss = "dice_sig"
    loss_sig = LossAPI(cfg_sig)
    labels_sig = jax.random.randint(k3, (N, D, H, W), 0, C + 1)
    gt_sig = jax.nn.one_hot(labels_sig, C + 1, axis=1, dtype=jnp.float32)
    res_s, total_s = loss_sig(out, gt_sig)
    total_s = jax.block_until_ready(total_s)

    ps = jax.nn.sigmoid(out).reshape(N, C, -1)
    gs = gt_sig.reshape(N, C + 1, -1)[:, 1:1 + C]
    inter_s = jnp.sum(ps * gs, axis=2)
    dice_s = (2 * inter_s + 1) / (jnp.sum(ps * ps, 2) + jnp.sum(gs * gs, 2) + 1)
    total_s_ref = cfg_sig.dice_scale * jnp.sum(1.0 - jnp.mean(dice_s, axis=0))
    assert abs(float(total_s) - float(total_s_ref)) < 2e-2, (float(total_s), float(total_s_ref))

    # ---- direct kernel check: multi-tile accumulation + forced outer split +
    #      clamped phantom grid step + row/lane tail mask
    #      (S2 = 2500 -> R = 20 rows, tR = 8, num_tiles = 3, grid 2x2 with one padded step)
    S2 = 2500
    x2 = jax.random.normal(k4, (N, C, S2), dtype=jnp.float32)
    g2 = jax.nn.one_hot(jax.random.randint(k2, (N, S2), 0, C), C, axis=1,
                        dtype=jnp.float32)
    sums2 = _dice_partial_sums(x2, g2, "softmax", 0, tile_rows=8).sum(axis=(1, 4))  # (N,3,C)
    p2 = jax.nn.softmax(x2, axis=1)
    ref2 = jnp.stack([jnp.sum(p2 * g2, 2), jnp.sum(p2 * p2, 2), jnp.sum(g2 * g2, 2)], axis=1)
    rel_err = jnp.max(jnp.abs(sums2 - ref2) / (jnp.abs(ref2) + 1.0))
    assert float(rel_err) < 2e-2, float(rel_err)

    # ---- inference paths (gt is None) ----
    preds = jax.block_until_ready(loss_api(out, None))
    preds_ref = (out == jnp.max(out, axis=1, keepdims=True)).astype(out.dtype)
    assert preds.shape == out.shape
    assert float(jnp.max(jnp.abs(preds - preds_ref))) == 0.0

    preds_sig = jax.block_until_ready(loss_sig(out, None))
    preds_sig_ref = (out >= 0).astype(out.dtype)
    assert float(jnp.max(jnp.abs(preds_sig - preds_sig_ref))) == 0.0

    print("KERNEL_OK")
</pallas_src>

<mosaic_0001>
module attributes {stable_mosaic.version = 11 : i64} {
  func.func @_dice_sums_kernel(%arg0: i32, %arg1: i32, %arg2: i32, %arg3: memref<1x4x2x128xf32, #tpu.memory_space<vmem>>, %arg4: memref<1x4x2x128xf32, #tpu.memory_space<vmem>>, %arg5: memref<1x1x3x4x128xf32, #tpu.memory_space<vmem>>, %arg6: memref<3x4x128xf32, #tpu.memory_space<vmem>>) attributes {dimension_semantics = [#tpu.dimension_semantics<parallel>, #tpu.dimension_semantics<parallel>, #tpu.dimension_semantics<arbitrary>], iteration_bounds = array<i64: 2, 1, 1>, scalar_prefetch = 0 : i64, scratch_operands = 1 : i64, tpu.core_type = #tpu.core_type<tc>, window_params = [{transform_indices = @transform_0, window_bounds = array<i64: 1, 4, 2, 128>}, {transform_indices = @transform_1, window_bounds = array<i64: 1, 4, 2, 128>}, {transform_indices = @transform_2, window_bounds = array<i64: 1, 1, 3, 4, 128>}]} {
    %c1_i32 = arith.constant 1 : i32
    %0 = arith.muli %arg1, %c1_i32 : i32
    %1 = arith.addi %0, %arg2 : i32
    %c0_i32 = arith.constant 0 : i32
    %2 = arith.cmpi eq, %arg2, %c0_i32 : i32
    %3 = arith.extui %2 : i1 to i32
    %c0_i32_0 = arith.constant 0 : i32
    %4 = arith.cmpi ne, %3, %c0_i32_0 : i32
    scf.if %4 {
      %cst_15 = arith.constant 0.000000e+00 : f32
      %28 = vector.broadcast %cst_15 : f32 to vector<3x4x128xf32>
      %c0_16 = arith.constant 0 : index
      %c0_17 = arith.constant 0 : index
      %c0_18 = arith.constant 0 : index
      %29 = vector.load %arg6[%c0_16, %c0_17, %c0_18] : memref<3x4x128xf32, #tpu.memory_space<vmem>>, vector<3x4x128xf32>
      tpu.vector_store %arg6[%c0_16, %c0_17, %c0_18], %28 {strides = array<i32>} : memref<3x4x128xf32, #tpu.memory_space<vmem>>, vector<3x4x128xf32>,
    } else {
    }
    %c0 = arith.constant 0 : index
    %c0_1 = arith.constant 0 : index
    %c0_2 = arith.constant 0 : index
    %c0_3 = arith.constant 0 : index
    %5 = vector.load %arg3[%c0, %c0_1, %c0_2, %c0_3] : memref<1x4x2x128xf32, #tpu.memory_space<vmem>>, vector<1x4x2x128xf32>
    %6 = vector.shape_cast %5 : vector<1x4x2x128xf32> to vector<4x2x128xf32>
    %c0_4 = arith.constant 0 : index
    %c0_5 = arith.constant 0 : index
    %c0_6 = arith.constant 0 : index
    %c0_7 = arith.constant 0 : index
    %7 = vector.load %arg4[%c0_4, %c0_5, %c0_6, %c0_7] : memref<1x4x2x128xf32, #tpu.memory_space<vmem>>, vector<1x4x2x128xf32>
    %8 = vector.shape_cast %7 : vector<1x4x2x128xf32> to vector<4x2x128xf32>
    %cst = arith.constant dense<0xFF800000> : vector<2x128xf32>
    %9 = vector.multi_reduction <maximumf>, %6, %cst [0] : vector<4x2x128xf32> to vector<2x128xf32>
    %10 = vector.shape_cast %9 : vector<2x128xf32> to vector<1x2x128xf32>
    %11 = vector.broadcast %10 : vector<1x2x128xf32> to vector<4x2x128xf32>
    %12 = arith.subf %6, %11 : vector<4x2x128xf32>
    %13 = math.exp %12 : vector<4x2x128xf32>
    %cst_8 = arith.constant dense<0.000000e+00> : vector<2x128xf32>
    %14 = vector.multi_reduction <add>, %13, %cst_8 [0] : vector<4x2x128xf32> to vector<2x128xf32>
    %15 = vector.shape_cast %14 : vector<2x128xf32> to vector<1x2x128xf32>
    %16 = tpu.reciprocal %15 {approx = true} : vector<1x2x128xf32> -> vector<1x2x128xf32>
    %17 = vector.broadcast %16 : vector<1x2x128xf32> to vector<4x2x128xf32>
    %18 = arith.mulf %13, %17 : vector<4x2x128xf32>
    %c0_i32_9 = arith.constant 0 : i32
    %19 = arith.cmpi slt, %1, %c0_i32_9 : i32
    %20 = arith.extui %19 : i1 to i32
    %c0_i32_10 = arith.constant 0 : i32
    %21 = arith.cmpi ne, %20, %c0_i32_10 : i32
    scf.if %21 {
      %c0_15 = arith.constant 0 : index
      %c0_16 = arith.constant 0 : index
      %c0_17 = arith.constant 0 : index
      %28 = vector.load %arg6[%c0_15, %c0_16, %c0_17] : memref<3x4x128xf32, #tpu.memory_space<vmem>>, vector<1x4x128xf32>
      %29 = vector.shape_cast %28 : vector<1x4x128xf32> to vector<4x128xf32>
      %30 = arith.mulf %18, %8 : vector<4x2x128xf32>
      %cst_18 = arith.constant dense<0.000000e+00> : vector<4x128xf32>
      %31 = vector.multi_reduction <add>, %30, %cst_18 [1] : vector<4x2x128xf32> to vector<4x128xf32>
      %32 = arith.addf %29, %31 : vector<4x128xf32>
      %c0_19 = arith.constant 0 : index
      %c0_20 = arith.constant 0 : index
      %c0_21 = arith.constant 0 : index
      %33 = vector.load %arg6[%c0_19, %c0_20, %c0_21] : memref<3x4x128xf32, #tpu.memory_space<vmem>>, vector<1x4x128xf32>
      %34 = vector.shape_cast %33 : vector<1x4x128xf32> to vector<4x128xf32>
      %35 = vector.shape_cast %32 : vector<4x128xf32> to vector<1x4x128xf32>
      tpu.vector_store %arg6[%c0_19, %c0_20, %c0_21], %35 {strides = array<i32>} : memref<3x4x128xf32, #tpu.memory_space<vmem>>, vector<1x4x128xf32>,
      %c1 = arith.constant 1 : index
      %c0_22 = arith.constant 0 : index
      %c0_23 = arith.constant 0 : index
      %36 = vector.load %arg6[%c1, %c0_22, %c0_23] : memref<3x4x128xf32, #tpu.memory_space<vmem>>, vector<1x4x128xf32>
      %37 = vector.shape_cast %36 : vector<1x4x128xf32> to vector<4x128xf32>
      %38 = arith.mulf %18, %18 : vector<4x2x128xf32>
      %cst_24 = arith.constant dense<0.000000e+00> : vector<4x128xf32>
      %39 = vector.multi_reduction <add>, %38, %cst_24 [1] : vector<4x2x128xf32> to vector<4x128xf32>
      %40 = arith.addf %37, %39 : vector<4x128xf32>
      %c1_25 = arith.constant 1 : index
      %c0_26 = arith.constant 0 : index
      %c0_27 = arith.constant 0 : index
      %41 = vector.load %arg6[%c1_25, %c0_26, %c0_27] : memref<3x4x128xf32, #tpu.memory_space<vmem>>, vector<1x4x128xf32>
      %42 = vector.shape_cast %41 : vector<1x4x128xf32> to vector<4x128xf32>
      %43 = vector.shape_cast %40 : vector<4x128xf32> to vector<1x4x128xf32>
      tpu.vector_store %arg6[%c1_25, %c0_26, %c0_27], %43 {strides = array<i32>} : memref<3x4x128xf32, #tpu.memory_space<vmem>>, vector<1x4x128xf32>,
      %c2 = arith.constant 2 : index
      %c0_28 = arith.constant 0 : index
      %c0_29 = arith.constant 0 : index
      %44 = vector.load %arg6[%c2, %c0_28, %c0_29] : memref<3x4x128xf32, #tpu.memory_space<vmem>>, vector<1x4x128xf32>
      %45 = vector.shape_cast %44 : vector<1x4x128xf32> to vector<4x128xf32>
      %46 = arith.mulf %8, %8 : vector<4x2x128xf32>
      %cst_30 = arith.constant dense<0.000000e+00> : vector<4x128xf32>
      %47 = vector.multi_reduction <add>, %46, %cst_30 [1] : vector<4x2x128xf32> to vector<4x128xf32>
      %48 = arith.addf %45, %47 : vector<4x128xf32>
      %c2_31 = arith.constant 2 : index
      %c0_32 = arith.constant 0 : index
      %c0_33 = arith.constant 0 : index
      %49 = vector.load %arg6[%c2_31, %c0_32, %c0_33] : memref<3x4x128xf32, #tpu.memory_space<vmem>>, vector<1x4x128xf32>
      %50 = vector.shape_cast %49 : vector<1x4x128xf32> to vector<4x128xf32>
      %51 = vector.shape_cast %48 : vector<4x128xf32> to vector<1x4x128xf32>
      tpu.vector_store %arg6[%c2_31, %c0_32, %c0_33], %51 {strides = array<i32>} : memref<3x4x128xf32, #tpu.memory_space<vmem>>, vector<1x4x128xf32>,
    } else {
    }
    %c0_i32_11 = arith.constant 0 : i32
    %22 = arith.cmpi sge, %1, %c0_i32_11 : i32
    %23 = arith.extui %22 : i1 to i32
    %c0_i32_12 = arith.constant 0 : i32
    %24 = arith.cmpi ne, %23, %c0_i32_12 : i32
    scf.if %24 {
      %28 = tpu.iota {dimensions = array<i32: 1>} : vector<4x2x128xi32>
      %29 = tpu.iota {dimensions = array<i32: 2>} : vector<4x2x128xi32>
      %c2_i32 = arith.constant 2 : i32
      %30 = arith.muli %1, %c2_i32 : i32
      %31 = vector.broadcast %30 : i32 to vector<4x2x128xi32>
      %32 = arith.addi %31, %28 : vector<4x2x128xi32>
      %c128_i32 = arith.constant 128 : i32
      %33 = vector.broadcast %c128_i32 : i32 to vector<4x2x128xi32>
      %34 = arith.muli %32, %33 : vector<4x2x128xi32>
      %35 = arith.addi %34, %29 : vector<4x2x128xi32>
      %c224_i32 = arith.constant 224 : i32
      %36 = vector.broadcast %c224_i32 : i32 to vector<4x2x128xi32>
      %37 = arith.cmpi slt, %35, %36 : vector<4x2x128xi32>
      %cst_15 = arith.constant 0.000000e+00 : f32
      %38 = vector.broadcast %cst_15 : f32 to vector<4x2x128xf32>
      %39 = arith.select %37, %18, %38 : vector<4x2x128xi1>, vector<4x2x128xf32>
      %cst_16 = arith.constant 0.000000e+00 : f32
      %40 = vector.broadcast %cst_16 : f32 to vector<4x2x128xf32>
      %41 = arith.select %37, %8, %40 : vector<4x2x128xi1>, vector<4x2x128xf32>
      %c0_17 = arith.constant 0 : index
      %c0_18 = arith.constant 0 : index
      %c0_19 = arith.constant 0 : index
      %42 = vector.load %arg6[%c0_17, %c0_18, %c0_19] : memref<3x4x128xf32, #tpu.memory_space<vmem>>, vector<1x4x128xf32>
      %43 = vector.shape_cast %42 : vector<1x4x128xf32> to vector<4x128xf32>
      %44 = arith.mulf %39, %41 : vector<4x2x128xf32>
      %cst_20 = arith.constant dense<0.000000e+00> : vector<4x128xf32>
      %45 = vector.multi_reduction <add>, %44, %cst_20 [1] : vector<4x2x128xf32> to vector<4x128xf32>
      %46 = arith.addf %43, %45 : vector<4x128xf32>
      %c0_21 = arith.constant 0 : index
      %c0_22 = arith.constant 0 : index
      %c0_23 = arith.constant 0 : index
      %47 = vector.load %arg6[%c0_21, %c0_22, %c0_23] : memref<3x4x128xf32, #tpu.memory_space<vmem>>, vector<1x4x128xf32>
      %48 = vector.shape_cast %47 : vector<1x4x128xf32> to vector<4x128xf32>
      %49 = vector.shape_cast %46 : vector<4x128xf32> to vector<1x4x128xf32>
      tpu.vector_store %arg6[%c0_21, %c0_22, %c0_23], %49 {strides = array<i32>} : memref<3x4x128xf32, #tpu.memory_space<vmem>>, vector<1x4x128xf32>,
      %c1 = arith.constant 1 : index
      %c0_24 = arith.constant 0 : index
      %c0_25 = arith.constant 0 : index
      %50 = vector.load %arg6[%c1, %c0_24, %c0_25] : memref<3x4x128xf32, #tpu.memory_space<vmem>>, vector<1x4x128xf32>
      %51 = vector.shape_cast %50 : vector<1x4x128xf32> to vector<4x128xf32>
      %52 = arith.mulf %39, %39 : vector<4x2x128xf32>
      %cst_26 = arith.constant dense<0.000000e+00> : vector<4x128xf32>
      %53 = vector.multi_reduction <add>, %52, %cst_26 [1] : vector<4x2x128xf32> to vector<4x128xf32>
      %54 = arith.addf %51, %53 : vector<4x128xf32>
      %c1_27 = arith.constant 1 : index
      %c0_28 = arith.constant 0 : index
      %c0_29 = arith.constant 0 : index
      %55 = vector.load %arg6[%c1_27, %c0_28, %c0_29] : memref<3x4x128xf32, #tpu.memory_space<vmem>>, vector<1x4x128xf32>
      %56 = vector.shape_cast %55 : vector<1x4x128xf32> to vector<4x128xf32>
      %57 = vector.shape_cast %54 : vector<4x128xf32> to vector<1x4x128xf32>
      tpu.vector_store %arg6[%c1_27, %c0_28, %c0_29], %57 {strides = array<i32>} : memref<3x4x128xf32, #tpu.memory_space<vmem>>, vector<1x4x128xf32>,
      %c2 = arith.constant 2 : index
      %c0_30 = arith.constant 0 : index
      %c0_31 = arith.constant 0 : index
      %58 = vector.load %arg6[%c2, %c0_30, %c0_31] : memref<3x4x128xf32, #tpu.memory_space<vmem>>, vector<1x4x128xf32>
      %59 = vector.shape_cast %58 : vector<1x4x128xf32> to vector<4x128xf32>
      %60 = arith.mulf %41, %41 : vector<4x2x128xf32>
      %cst_32 = arith.constant dense<0.000000e+00> : vector<4x128xf32>
      %61 = vector.multi_reduction <add>, %60, %cst_32 [1] : vector<4x2x128xf32> to vector<4x128xf32>
      %62 = arith.addf %59, %61 : vector<4x128xf32>
      %c2_33 = arith.constant 2 : index
      %c0_34 = arith.constant 0 : index
      %c0_35 = arith.constant 0 : index
      %63 = vector.load %arg6[%c2_33, %c0_34, %c0_35] : memref<3x4x128xf32, #tpu.memory_space<vmem>>, vector<1x4x128xf32>
      %64 = vector.shape_cast %63 : vector<1x4x128xf32> to vector<4x128xf32>
      %65 = vector.shape_cast %62 : vector<4x128xf32> to vector<1x4x128xf32>
      tpu.vector_store %arg6[%c2_33, %c0_34, %c0_35], %65 {strides = array<i32>} : memref<3x4x128xf32, #tpu.memory_space<vmem>>, vector<1x4x128xf32>,
    } else {
    }
    %c0_i32_13 = arith.constant 0 : i32
    %25 = arith.cmpi eq, %arg2, %c0_i32_13 : i32
    %26 = arith.extui %25 : i1 to i32
    %c0_i32_14 = arith.constant 0 : i32
    %27 = arith.cmpi ne, %26, %c0_i32_14 : i32
    scf.if %27 {
      %c0_15 = arith.constant 0 : index
      %c0_16 = arith.constant 0 : index
      %c0_17 = arith.constant 0 : index
      %28 = vector.load %arg6[%c0_15, %c0_16, %c0_17] : memref<3x4x128xf32, #tpu.memory_space<vmem>>, vector<3x4x128xf32>
      %29 = vector.shape_cast %28 : vector<3x4x128xf32> to vector<1x1x3x4x128xf32>
      %c0_18 = arith.constant 0 : index
      %c0_19 = arith.constant 0 : index
      %c0_20 = arith.constant 0 : index
      %c0_21 = arith.constant 0 : index
      %c0_22 = arith.constant 0 : index
      %30 = vector.load %arg5[%c0_18, %c0_19, %c0_20, %c0_21, %c0_22] : memref<1x1x3x4x128xf32, #tpu.memory_space<vmem>>, vector<1x1x3x4x128xf32>
      tpu.vector_store %arg5[%c0_18, %c0_19, %c0_20, %c0_21, %c0_22], %29 {strides = array<i32>} : memref<1x1x3x4x128xf32, #tpu.memory_space<vmem>>, vector<1x1x3x4x128xf32>,
    } else {
    }
    return
  }
  func.func @transform_0(%arg0: i32, %arg1: i32, %arg2: i32) -> (i32, i32, i32, i32) {
    %c1_i32 = arith.constant 1 : i32
    %0 = arith.muli %arg1, %c1_i32 : i32
    %1 = arith.addi %0, %arg2 : i32
    %c0_i32 = arith.constant 0 : i32
    %2 = arith.minsi %1, %c0_i32 : i32
    %c0_i32_0 = arith.constant 0 : i32
    %c0_i32_1 = arith.constant 0 : i32
    %c0_i32_2 = arith.constant 0 : i32
    return %arg0, %c0_i32_0, %2, %c0_i32_1 : i32, i32, i32, i32
  }
  func.func @transform_1(%arg0: i32, %arg1: i32, %arg2: i32) -> (i32, i32, i32, i32) {
    %c1_i32 = arith.constant 1 : i32
    %0 = arith.muli %arg1, %c1_i32 : i32
    %1 = arith.addi %0, %arg2 : i32
    %c0_i32 = arith.constant 0 : i32
    %2 = arith.minsi %1, %c0_i32 : i32
    %c0_i32_0 = arith.constant 0 : i32
    %c0_i32_1 = arith.constant 0 : i32
    %c0_i32_2 = arith.constant 0 : i32
    return %arg0, %c0_i32_0, %2, %c0_i32_1 : i32, i32, i32, i32
  }
  func.func @transform_2(%arg0: i32, %arg1: i32, %arg2: i32) -> (i32, i32, i32, i32, i32) {
    %c0_i32 = arith.constant 0 : i32
    %c0_i32_0 = arith.constant 0 : i32
    %c0_i32_1 = arith.constant 0 : i32
    %c0_i32_2 = arith.constant 0 : i32
    return %arg0, %arg1, %c0_i32, %c0_i32_0, %c0_i32_1 : i32, i32, i32, i32, i32
  }
}

</mosaic_0001>

<llo_original>
// kernel: tpu_custom_call.1
$region0: #{tpu_custom_call.1}
  #allocation0 [shape = 'u32[]', space=smem, size = 0x4, offset = 0x4, fixed_abs, tag = 'smem constant byte address 0x4 - core index']
  #allocation1 [shape = 'u32[144,128]{1,0:T(1,128)}', space=vmem, size = 0x12000, scoped, tag = 'internal scratch']
  #allocation2 [shape = 'f32[3,4,128]{2,1,0:T(4,128)}', space=vmem, size = 0x1800, scoped, tag = 'scratch operand']
  %s0 = inlined_call_operand.hbm [shape: f32[2,4,2,128], index: 0, kind: input, shape index: {}]
  %s1 = inlined_call_operand.hbm [shape: f32[2,4,2,128], index: 1, kind: input, shape index: {}]
  %s2 = inlined_call_operand.hbm [shape: f32[2,1,3,4,128], index: 2, kind: output, shape index: {}]
  %s3 = sld [smem:[#allocation0]]
  $region65: #{tpu_custom_call.1} parent=0
    _
  %s5 = ssub.s32 1, %s3
  %s6 = scalar_select 0, %s5, %s3
  $region1: #{tpu_custom_call.1} parent=0
    #allocation3 [shape = 'u8[8192]{0}', space=vmem, size = 0x2000, scoped, tag = 'input window, operand 0']
    #allocation4 [shape = 's32[2]{0}', space=sflag, size = 0x8, scoped, tag = 'scoped memory for tpu_custom_call.1']
    #allocation5 [shape = 's32[2]{0}', space=sflag, size = 0x8, scoped, tag = 'scoped memory for tpu_custom_call.1']
    #allocation6 [shape = 'u8[8192]{0}', space=vmem, size = 0x2000, scoped, tag = 'input window, operand 1']
    #allocation7 [shape = 's32[2]{0}', space=sflag, size = 0x8, scoped, tag = 'scoped memory for tpu_custom_call.1']
    #allocation8 [shape = 'u8[12288]{0}', space=vmem, size = 0x3000, scoped, tag = 'output window, operand 0']
    %7 = vsyncpa [#allocation4], 0
    %s8 = scalar_lea.sflag [#allocation4], 1
    %9 = vsyncpa %s8, 0
    %10 = vsyncpa [#allocation7], 0
    %s11 = scalar_lea.sflag [#allocation7], 1
    %12 = vsyncpa %s11, 0
    %13 = vsyncpa [#allocation5], 0
    %s14 = scalar_lea.sflag [#allocation5], 1
    %15 = vsyncpa %s14, 0
    loop: start=0, step=1, limit=4
    $region2: #{tpu_custom_call.1} parent=1 // loop_pre_header
      _
    $region3: #{tpu_custom_call.1} parent=1 // loop_header
      %s17 = sphi 0, %s21
      %p18 = scmp.ge.s32.totalorder %s17, 4
      %s24 = sphi 0, %s43
      %s25 = sphi 0, %s39
      %s26 = sphi 0, %s35
      %s27 = sphi 0, %s24
      %s28 = sphi 0, %s25
      %s29 = sphi 0, %s26
      %s30 = sphi 0, %s27
      %s31 = sphi 0, %s28
      %s32 = sphi 0, %s29
      %s54 = sphi 0, %s56
      %s57 = sphi 0, %s54
      %s58 = sphi 0, %s57
      %s74 = sphi 0, %s58
      %s88 = sphi 0, %s90
      %s91 = sphi 0, %s88
      %s92 = sphi 0, %s91
      %s108 = sphi 0, %s92
      %s116 = sphi 0, %s118
      %s119 = sphi 0, %s116
      %s120 = sphi 0, %s119
      %s136 = sphi 0, %s120
    $region4: #{tpu_custom_call.1} parent=1 // loop_header_branch
      %20 = sbr.rel (%p18) target = $region8
    $region5: #{tpu_custom_call.1} parent=1 // loop_body
      %s22 = ssub.s32 %s17, 1
      %s23 = ssub.s32 %s17, 2
      %s33 = sadd.s32 1, %s26
      %p34 = scmp.ge.s32.totalorder %s33, 1
      %s35 = scalar_select %p34, 0, %s33
      %s36 = sadd.s32 1, %s25
      %s37 = scalar_select %p34, %s36, %s25
      %p38 = scmp.ge.s32.totalorder %s37, 1
      %s39 = scalar_select %p38, 0, %s37
      %s40 = sadd.s32 1, %s24
      %s41 = scalar_select %p38, %s40, %s24
      %p42 = scmp.ge.s32.totalorder %s41, 2
      %s43 = scalar_select %p42, 0, %s41
      %s44 = sadd.s32 %s25, %s26
      %p45 = scmp.lt.s32.totalorder %s44, 0
      %s46 = scalar_select %p45, %s44, 0
      %s47 = sadd.s32 %s39, %s35
      %p48 = scmp.lt.s32.totalorder %s47, 0
      %s49 = scalar_select %p48, %s47, 0
      %s50 = ssub.s32 %s24, %s43
      %s51 = ssub.s32 %s46, %s49
      %s52 = sor.u32 %s50, %s51
      %p53 = scmp.eq.s32.totalorder %s52, 0
      %s55 = sadd.s32 %s54, 1
      %s56 = scalar_select %p53, %s54, %s55
      %p59 = pneg %p53
      %p60 = scmp.eq.s32.totalorder %s17, 1
      %p61 = por %p59, %p60
      %p62 = scmp.ne.s32.totalorder %s54, %s57
      %p63 = scmp.eq.s32.totalorder %s17, 0
      %p64 = por %p62, %p63
      %p65 = scmp.ne.s32.totalorder %s54, %s57
      %p66 = scmp.eq.s32.totalorder %s22, 1
      %p67 = por %p65, %p66
      %p68 = scmp.ne.s32.totalorder %s57, %s58
      %p69 = scmp.eq.s32.totalorder %s22, 0
      %p70 = por %p68, %p69
      %p71 = scmp.ne.s32.totalorder %s57, %s58
      %p72 = scmp.eq.s32.totalorder %s23, 1
      %p73 = por %p71, %p72
      %p75 = scmp.ne.s32.totalorder %s58, %s74
      %p76 = scmp.eq.s32.totalorder %s23, 0
      %p77 = por %p75, %p76
      %s78 = sadd.s32 %s25, %s26
      %p79 = scmp.lt.s32.totalorder %s78, 0
      %s80 = scalar_select %p79, %s78, 0
      %s81 = sadd.s32 %s39, %s35
      %p82 = scmp.lt.s32.totalorder %s81, 0
      %s83 = scalar_select %p82, %s81, 0
      %s84 = ssub.s32 %s24, %s43
      %s85 = ssub.s32 %s80, %s83
      %s86 = sor.u32 %s84, %s85
      %p87 = scmp.eq.s32.totalorder %s86, 0
      %s89 = sadd.s32 %s88, 1
      %s90 = scalar_select %p87, %s88, %s89
      %p93 = pneg %p87
      %p94 = scmp.eq.s32.totalorder %s17, 1
      %p95 = por %p93, %p94
      %p96 = scmp.ne.s32.totalorder %s88, %s91
      %p97 = scmp.eq.s32.totalorder %s17, 0
      %p98 = por %p96, %p97
      %p99 = scmp.ne.s32.totalorder %s88, %s91
      %p100 = scmp.eq.s32.totalorder %s22, 1
      %p101 = por %p99, %p100
      %p102 = scmp.ne.s32.totalorder %s91, %s92
      %p103 = scmp.eq.s32.totalorder %s22, 0
      %p104 = por %p102, %p103
      %p105 = scmp.ne.s32.totalorder %s91, %s92
      %p106 = scmp.eq.s32.totalorder %s23, 1
      %p107 = por %p105, %p106
      %p109 = scmp.ne.s32.totalorder %s92, %s108
      %p110 = scmp.eq.s32.totalorder %s23, 0
      %p111 = por %p109, %p110
      %s112 = ssub.s32 %s24, %s43
      %s113 = ssub.s32 %s25, %s39
      %s114 = sor.u32 %s112, %s113
      %p115 = scmp.eq.s32.totalorder %s114, 0
      %s117 = sadd.s32 %s116, 1
      %s118 = scalar_select %p115, %s116, %s117
      %p121 = pneg %p115
      %p122 = scmp.eq.s32.totalorder %s17, 1
      %p123 = por %p121, %p122
      %p124 = scmp.ne.s32.totalorder %s116, %s119
      %p125 = scmp.eq.s32.totalorder %s17, 0
      %p126 = por %p124, %p125
      %p127 = scmp.ne.s32.totalorder %s116, %s119
      %p128 = scmp.eq.s32.totalorder %s22, 1
      %p129 = por %p127, %p128
      %p130 = scmp.ne.s32.totalorder %s119, %s120
      %p131 = scmp.eq.s32.totalorder %s22, 0
      %p132 = por %p130, %p131
      %p133 = scmp.ne.s32.totalorder %s119, %s120
      %p134 = scmp.eq.s32.totalorder %s23, 1
      %p135 = por %p133, %p134
      %p137 = scmp.ne.s32.totalorder %s120, %s136
      %p138 = scmp.eq.s32.totalorder %s23, 0
      %p139 = por %p137, %p138
      %p140 = scmp.le.s32.totalorder 1, %s17
      %p141 = scmp.lt.s32.totalorder %s17, 3
      %p142 = pnand %p140, %p141
      %p143 = pneg %p142
      // Predicated region
      $region9: #{tpu_custom_call.1} parent=5 // pred_check
        _
      $region10: #{tpu_custom_call.1} parent=5 // pred_check_branch
        %145 = sbr.rel (%p142) target = $region12
      $region11: #{tpu_custom_call.1} parent=5 // pred_region
        %s146 = ssub.s32 %s17, 1
      $region12: #{tpu_custom_call.1} parent=5 // pred_fallthru
        _
      %p147 = scmp.lt.s32.totalorder %s17, 2
      // Predicated region
      $region13: #{tpu_custom_call.1} parent=5 // pred_check
        %p148 = pneg %p147
      $region14: #{tpu_custom_call.1} parent=5 // pred_check_branch
        %150 = sbr.rel (%p148) target = $region16
      $region15: #{tpu_custom_call.1} parent=5 // pred_region
        // Predicated region
        $region17: #{tpu_custom_call.1} parent=15 // pred_check
          %p151 = pneg %p64
        $region18: #{tpu_custom_call.1} parent=15 // pred_check_branch
          %153 = sbr.rel (%p151) target = $region20
        $region19: #{tpu_custom_call.1} parent=15 // pred_region
          %s154 = sand.u32 %s54, 1
          %s155 = scalar_lea.sflag [#allocation4], %s154
          %s156 = sand.u32 %s54, 1
          %s157 = smul.addr %s156, 8
          %s158 = scalar_lea.vmem [#allocation3], %s157
          %s159 = sadd.s32 %s25, %s26
          %p160 = scmp.lt.s32.totalorder %s159, 0
          %s161 = scalar_select %p160, %s159, 0
          %s163 = ssub.s32 128, 128
          %164 = vsyncadd %s155, %s163
          %s165 = smul.addr %s24, 4
          %s166 = sadd.s32 %s161, %s165
          %s167 = smul.addr %s166, 32
          %s168 = scalar_lea.hbm %s0, %s167
          %s169 = sshll.u32 %s158, 4
          %s170 = int_to_ptr.vmem [resolvable:$true] %s169
          %175 = dma.hbm_to_vmem [thread:$0]  %s168, 128, %s170, %s155, 32, 32, 2
        $region20: #{tpu_custom_call.1} parent=15 // pred_fallthru
          _
        // Predicated region
        $region21: #{tpu_custom_call.1} parent=15 // pred_check
          %p176 = pneg %p98
        $region22: #{tpu_custom_call.1} parent=15 // pred_check_branch
          %178 = sbr.rel (%p176) target = $region24
        $region23: #{tpu_custom_call.1} parent=15 // pred_region
          %s179 = sand.u32 %s88, 1
          %s180 = scalar_lea.sflag [#allocation7], %s179
          %s181 = sand.u32 %s88, 1
          %s182 = smul.addr %s181, 8
          %s183 = scalar_lea.vmem [#allocation6], %s182
          %s184 = sadd.s32 %s25, %s26
          %p185 = scmp.lt.s32.totalorder %s184, 0
          %s186 = scalar_select %p185, %s184, 0
          %s188 = ssub.s32 128, 128
          %189 = vsyncadd %s180, %s188
          %s190 = smul.addr %s24, 4
          %s191 = sadd.s32 %s186, %s190
          %s192 = smul.addr %s191, 32
          %s193 = scalar_lea.hbm %s1, %s192
          %s194 = sshll.u32 %s183, 4
          %s195 = int_to_ptr.vmem [resolvable:$true] %s194
          %200 = dma.hbm_to_vmem [thread:$0]  %s193, 128, %s195, %s180, 32, 32, 2
        $region24: #{tpu_custom_call.1} parent=15 // pred_fallthru
          _
      $region16: #{tpu_custom_call.1} parent=5 // pred_fallthru
        _
      %p201 = scmp.le.s32.totalorder 1, %s17
      %p202 = scmp.lt.s32.totalorder %s17, 3
      %p203 = pnand %p201, %p202
      %p204 = pneg %p203
      // Predicated region
      $region25: #{tpu_custom_call.1} parent=5 // pred_check
        _
      $region26: #{tpu_custom_call.1} parent=5 // pred_check_branch
        %206 = sbr.rel (%p203) target = $region28
      $region27: #{tpu_custom_call.1} parent=5 // pred_region
        %s207 = ssub.s32 %s17, 1
        %s208 = sand.u32 %s57, 1
        %s209 = scalar_lea.sflag [#allocation4], %s208
        %s210 = sand.u32 %s57, 1
        %s211 = smul.addr %s210, 8
        %s212 = scalar_lea.vmem [#allocation3], %s211
        // Predicated region
        $region29: #{tpu_custom_call.1} parent=27 // pred_check
          %p213 = pneg %p70
        $region30: #{tpu_custom_call.1} parent=27 // pred_check_branch
          %215 = sbr.rel (%p213) target = $region32
        $region31: #{tpu_custom_call.1} parent=27 // pred_region
          %216 = dma.done %s209, 128
        $region32: #{tpu_custom_call.1} parent=27 // pred_fallthru
          _
        %s217 = sand.u32 %s91, 1
        %s218 = scalar_lea.sflag [#allocation7], %s217
        %s219 = sand.u32 %s91, 1
        %s220 = smul.addr %s219, 8
        %s221 = scalar_lea.vmem [#allocation6], %s220
        // Predicated region
        $region33: #{tpu_custom_call.1} parent=27 // pred_check
          %p222 = pneg %p104
        $region34: #{tpu_custom_call.1} parent=27 // pred_check_branch
          %224 = sbr.rel (%p222) target = $region36
        $region35: #{tpu_custom_call.1} parent=27 // pred_region
          %225 = dma.done %s218, 128
        $region36: #{tpu_custom_call.1} parent=27 // pred_fallthru
          _
        %s226 = sand.u32 %s57, 1
        %s227 = scalar_lea.sflag [#allocation4], %s226
        %s228 = sand.u32 %s57, 1
        %s229 = smul.addr %s228, 8
        %s230 = scalar_lea.vmem [#allocation3], %s229
        %p231 = pneg %p70
        %p232 = pneg %p67
        %s233 = sand.u32 %s91, 1
        %s234 = scalar_lea.sflag [#allocation7], %s233
        %s235 = sand.u32 %s91, 1
        %s236 = smul.addr %s235, 8
        %s237 = scalar_lea.vmem [#allocation6], %s236
        %p238 = pneg %p104
        %p239 = pneg %p101
        %p240 = pneg %p132
        %p241 = pneg %p129
        %s242 = sand.u32 %s119, 1
        %s243 = scalar_lea.sflag [#allocation5], %s242
        %s244 = sand.u32 %s119, 1
        %s245 = smul.addr %s244, 12
        %s246 = scalar_lea.vmem [#allocation8], %s245
        %s247 = sadd.s32 %s28, %s29
        %p248 = scmp.lt.s32.totalorder %s247, 0
        %s249 = scalar_select %p248, %s247, 0
        %s250 = sadd.s32 %s28, %s29
        %p251 = scmp.lt.s32.totalorder %s250, 0
        %s252 = scalar_select %p251, %s250, 0
        %s253 = sadd.s32 %s28, %s29
        %p254 = scmp.eq.s32.totalorder %s29, 0
        // Predicated region
        $region37: #{tpu_custom_call.1} parent=27 // pred_check
          %p255 = pneg %p254
        $region38: #{tpu_custom_call.1} parent=27 // pred_check_branch
          %257 = sbr.rel (%p255) target = $region40
        $region39: #{tpu_custom_call.1} parent=27 // pred_region
          %258 = vst [vmem:[#allocation2] sm:$0xf] 0.0
          %259 = vst [vmem:[#allocation2 + $0x4] sm:$0xf] 0.0
          %260 = vst [vmem:[#allocation2 + $0x8] sm:$0xf] 0.0
        $region40: #{tpu_custom_call.1} parent=27 // pred_fallthru
          _
        %v261 = vld [vmem:[%s212] sm:$0x3]
        %v262 = vld [vmem:[%s212 + $0x2] sm:$0x3]
        %v263 = vld [vmem:[%s212 + $0x4] sm:$0x3]
        %v264 = vld [vmem:[%s212 + $0x6] sm:$0x3]
        %v265 = vld [vmem:[%s221] sm:$0x3]
        %v266 = vld [vmem:[%s221 + $0x2] sm:$0x3]
        %v267 = vld [vmem:[%s221 + $0x4] sm:$0x3]
        %v268 = vld [vmem:[%s221 + $0x6] sm:$0x3]
        %vm269 = vcmask 1041408
        %v270 = vsel %vm269, %v261, -inf
        %v271 = vsel %vm269, %v262, -inf
        %v272 = vsel %vm269, %v263, -inf
        %v273 = vsel %vm269, %v264, -inf
        %v274 = vmax.f32 %v270, %v271
        %v275 = vmax.f32 %v272, %v273
        %v276 = vmax.f32 %v274, %v275
        %v277 = vsub.f32 %v261, %v276
        %v278 = vsub.f32 %v262, %v276
        %v279 = vsub.f32 %v263, %v276
        %v280 = vsub.f32 %v264, %v276
        %v281 = vmul.f32 %v277, 1.442695
        %v282 = vpow.pop %v281
        %v283 = vmul.f32 %v278, 1.442695
        %v284 = vpow.pop %v283
        %v285 = vmul.f32 %v279, 1.442695
        %v286 = vpow.pop %v285
        %v287 = vmul.f32 %v280, 1.442695
        %v288 = vpow.pop %v287
        %v289 = vsel %vm269, %v282, 0.0
        %v290 = vsel %vm269, %v284, 0.0
        %v291 = vadd.f32 %v289, %v290
        %v292 = vsel %vm269, %v286, 0.0
        %v293 = vadd.f32 %v291, %v292
        %v294 = vsel %vm269, %v288, 0.0
        %v295 = vadd.f32 %v293, %v294
        %v296 = vrcp.pop %v295
        %v297 = vmul.f32 %v282, %v296
        %v298 = vmul.f32 %v284, %v296
        %v299 = vmul.f32 %v286, %v296
        %v300 = vmul.f32 %v288, %v296
        %p301 = scmp.lt.s32.totalorder %s253, 0
        // Predicated region
        $region41: #{tpu_custom_call.1} parent=27 // pred_check
          %p302 = pneg %p301
        $region42: #{tpu_custom_call.1} parent=27 // pred_check_branch
          %304 = sbr.rel (%p302) target = $region44
        $region43: #{tpu_custom_call.1} parent=27 // pred_region
          %v305 = vld [vmem:[#allocation2] sm:$0xf]
          %v306 = vmul.f32 %v297, %v265
          %v307 = vmul.f32 %v298, %v266
          %v308 = vmul.f32 %v299, %v267
          %v309 = vmul.f32 %v300, %v268
          %v310 = vsel %vm269, %v306, 0.0
          %v311 = vrot.slane %v310, 4
          %v312 = vadd.f32 %v310, %v311
          %v313 = vrot.slane %v312, 2
          %v314 = vadd.f32 %v312, %v313
          %v315 = vrot.slane %v314, 1
          %v316 = vadd.f32 %v314, %v315
          %v317 = vsel %vm269, %v307, 0.0
          %v318 = vrot.slane %v317, 4
          %v319 = vadd.f32 %v317, %v318
          %v320 = vrot.slane %v319, 2
          %v321 = vadd.f32 %v319, %v320
          %v322 = vrot.slane %v321, 1
          %v323 = vadd.f32 %v321, %v322
          %v324 = vsel %vm269, %v308, 0.0
          %v325 = vrot.slane %v324, 4
          %v326 = vadd.f32 %v324, %v325
          %v327 = vrot.slane %v326, 2
          %v328 = vadd.f32 %v326, %v327
          %v329 = vrot.slane %v328, 1
          %v330 = vadd.f32 %v328, %v329
          %v331 = vsel %vm269, %v309, 0.0
          %v332 = vrot.slane %v331, 4
          %v333 = vadd.f32 %v331, %v332
          %v334 = vrot.slane %v333, 2
          %v335 = vadd.f32 %v333, %v334
          %v336 = vrot.slane %v335, 1
          %v337 = vadd.f32 %v335, %v336
          %vm342 = vcmask 1041409
          %v343 = vsel %vm342, %v323, %v316
          %vm344 = vcmask 1042434
          %v345 = vsel %vm344, %v330, %v343
          %vm346 = vcmask 1043459
          %v347 = vsel %vm346, %v337, %v345
          %v349 = vadd.f32 %v305, %v347
          %350 = vst [vmem:[#allocation2] sm:$0xf] %v349
          %s351 = scalar_lea.vmem [#allocation2], 4
          %v352 = vld [vmem:[%s351] sm:$0xf]
          %v353 = vmul.f32 %v297, %v297
          %v354 = vmul.f32 %v298, %v298
          %v355 = vmul.f32 %v299, %v299
          %v356 = vmul.f32 %v300, %v300
          %v357 = vsel %vm269, %v353, 0.0
          %v358 = vrot.slane %v357, 4
          %v359 = vadd.f32 %v357, %v358
          %v360 = vrot.slane %v359, 2
          %v361 = vadd.f32 %v359, %v360
          %v362 = vrot.slane %v361, 1
          %v363 = vadd.f32 %v361, %v362
          %v364 = vsel %vm269, %v354, 0.0
          %v365 = vrot.slane %v364, 4
          %v366 = vadd.f32 %v364, %v365
          %v367 = vrot.slane %v366, 2
          %v368 = vadd.f32 %v366, %v367
          %v369 = vrot.slane %v368, 1
          %v370 = vadd.f32 %v368, %v369
          %v371 = vsel %vm269, %v355, 0.0
          %v372 = vrot.slane %v371, 4
          %v373 = vadd.f32 %v371, %v372
          %v374 = vrot.slane %v373, 2
          %v375 = vadd.f32 %v373, %v374
          %v376 = vrot.slane %v375, 1
          %v377 = vadd.f32 %v375, %v376
          %v378 = vsel %vm269, %v356, 0.0
          %v379 = vrot.slane %v378, 4
          %v380 = vadd.f32 %v378, %v379
          %v381 = vrot.slane %v380, 2
          %v382 = vadd.f32 %v380, %v381
          %v383 = vrot.slane %v382, 1
          %v384 = vadd.f32 %v382, %v383
          %v389 = vsel %vm342, %v370, %v363
          %v390 = vsel %vm344, %v377, %v389
          %v391 = vsel %vm346, %v384, %v390
          %v393 = vadd.f32 %v352, %v391
          %394 = vst [vmem:[%s351] sm:$0xf] %v393
          %s395 = scalar_lea.vmem [#allocation2], 8
          %v396 = vld [vmem:[%s395] sm:$0xf]
          %v397 = vmul.f32 %v265, %v265
          %v398 = vmul.f32 %v266, %v266
          %v399 = vmul.f32 %v267, %v267
          %v400 = vmul.f32 %v268, %v268
          %v401 = vsel %vm269, %v397, 0.0
          %v402 = vrot.slane %v401, 4
          %v403 = vadd.f32 %v401, %v402
          %v404 = vrot.slane %v403, 2
          %v405 = vadd.f32 %v403, %v404
          %v406 = vrot.slane %v405, 1
          %v407 = vadd.f32 %v405, %v406
          %v408 = vsel %vm269, %v398, 0.0
          %v409 = vrot.slane %v408, 4
          %v410 = vadd.f32 %v408, %v409
          %v411 = vrot.slane %v410, 2
          %v412 = vadd.f32 %v410, %v411
          %v413 = vrot.slane %v412, 1
          %v414 = vadd.f32 %v412, %v413
          %v415 = vsel %vm269, %v399, 0.0
          %v416 = vrot.slane %v415, 4
          %v417 = vadd.f32 %v415, %v416
          %v418 = vrot.slane %v417, 2
          %v419 = vadd.f32 %v417, %v418
          %v420 = vrot.slane %v419, 1
          %v421 = vadd.f32 %v419, %v420
          %v422 = vsel %vm269, %v400, 0.0
          %v423 = vrot.slane %v422, 4
          %v424 = vadd.f32 %v422, %v423
          %v425 = vrot.slane %v424, 2
          %v426 = vadd.f32 %v424, %v425
          %v427 = vrot.slane %v426, 1
          %v428 = vadd.f32 %v426, %v427
          %v433 = vsel %vm342, %v414, %v407
          %v434 = vsel %vm344, %v421, %v433
          %v435 = vsel %vm346, %v428, %v434
          %v437 = vadd.f32 %v396, %v435
          %438 = vst [vmem:[%s395] sm:$0xf] %v437
        $region44: #{tpu_custom_call.1} parent=27 // pred_fallthru
          _
        %p439 = scmp.ge.s32.totalorder %s253, 0
        // Predicated region
        $region45: #{tpu_custom_call.1} parent=27 // pred_check
          %p440 = pneg %p439
        $region46: #{tpu_custom_call.1} parent=27 // pred_check_branch
          %442 = sbr.rel (%p440) target = $region48
        $region47: #{tpu_custom_call.1} parent=27 // pred_region
          %v443 = vlaneseq
          %v444 = vshrl.u32 %v443, 7
          %v445 = vlaneseq
          %v446 = vand.u32 %v445, 127
          %s447 = smul.u32 %s253, 2
          %v448 = vstv %s447
          %v449 = vadd.s32 %v448, %v444
          %v450 = vmul.u32 %v449, 128
          %v451 = vadd.s32 %v450, %v446
          %vm452 = vcmp.lt.s32.totalorder %v451, 224
          %v453 = vsel %vm452, %v297, 0.0
          %v454 = vsel %vm452, %v298, 0.0
          %v455 = vsel %vm452, %v299, 0.0
          %v456 = vsel %vm452, %v300, 0.0
          %v457 = vsel %vm452, %v265, 0.0
          %v458 = vsel %vm452, %v266, 0.0
          %v459 = vsel %vm452, %v267, 0.0
          %v460 = vsel %vm452, %v268, 0.0
          %v461 = vld [vmem:[#allocation2] sm:$0xf]
          %v462 = vmul.f32 %v453, %v457
          %v463 = vmul.f32 %v454, %v458
          %v464 = vmul.f32 %v455, %v459
          %v465 = vmul.f32 %v456, %v460
          %v466 = vsel %vm269, %v462, 0.0
          %v467 = vrot.slane %v466, 4
          %v468 = vadd.f32 %v466, %v467
          %v469 = vrot.slane %v468, 2
          %v470 = vadd.f32 %v468, %v469
          %v471 = vrot.slane %v470, 1
          %v472 = vadd.f32 %v470, %v471
          %v473 = vsel %vm269, %v463, 0.0
          %v474 = vrot.slane %v473, 4
          %v475 = vadd.f32 %v473, %v474
          %v476 = vrot.slane %v475, 2
          %v477 = vadd.f32 %v475, %v476
          %v478 = vrot.slane %v477, 1
          %v479 = vadd.f32 %v477, %v478
          %v480 = vsel %vm269, %v464, 0.0
          %v481 = vrot.slane %v480, 4
          %v482 = vadd.f32 %v480, %v481
          %v483 = vrot.slane %v482, 2
          %v484 = vadd.f32 %v482, %v483
          %v485 = vrot.slane %v484, 1
          %v486 = vadd.f32 %v484, %v485
          %v487 = vsel %vm269, %v465, 0.0
          %v488 = vrot.slane %v487, 4
          %v489 = vadd.f32 %v487, %v488
          %v490 = vrot.slane %v489, 2
          %v491 = vadd.f32 %v489, %v490
          %v492 = vrot.slane %v491, 1
          %v493 = vadd.f32 %v491, %v492
          %vm498 = vcmask 1041409
          %v499 = vsel %vm498, %v479, %v472
          %vm500 = vcmask 1042434
          %v501 = vsel %vm500, %v486, %v499
          %vm502 = vcmask 1043459
          %v503 = vsel %vm502, %v493, %v501
          %v505 = vadd.f32 %v461, %v503
          %506 = vst [vmem:[#allocation2] sm:$0xf] %v505
          %s507 = scalar_lea.vmem [#allocation2], 4
          %v508 = vld [vmem:[%s507] sm:$0xf]
          %v509 = vmul.f32 %v453, %v453
          %v510 = vmul.f32 %v454, %v454
          %v511 = vmul.f32 %v455, %v455
          %v512 = vmul.f32 %v456, %v456
          %v513 = vsel %vm269, %v509, 0.0
          %v514 = vrot.slane %v513, 4
          %v515 = vadd.f32 %v513, %v514
          %v516 = vrot.slane %v515, 2
          %v517 = vadd.f32 %v515, %v516
          %v518 = vrot.slane %v517, 1
          %v519 = vadd.f32 %v517, %v518
          %v520 = vsel %vm269, %v510, 0.0
          %v521 = vrot.slane %v520, 4
          %v522 = vadd.f32 %v520, %v521
          %v523 = vrot.slane %v522, 2
          %v524 = vadd.f32 %v522, %v523
          %v525 = vrot.slane %v524, 1
          %v526 = vadd.f32 %v524, %v525
          %v527 = vsel %vm269, %v511, 0.0
          %v528 = vrot.slane %v527, 4
          %v529 = vadd.f32 %v527, %v528
          %v530 = vrot.slane %v529, 2
          %v531 = vadd.f32 %v529, %v530
          %v532 = vrot.slane %v531, 1
          %v533 = vadd.f32 %v531, %v532
          %v534 = vsel %vm269, %v512, 0.0
          %v535 = vrot.slane %v534, 4
          %v536 = vadd.f32 %v534, %v535
          %v537 = vrot.slane %v536, 2
          %v538 = vadd.f32 %v536, %v537
          %v539 = vrot.slane %v538, 1
          %v540 = vadd.f32 %v538, %v539
          %v545 = vsel %vm498, %v526, %v519
          %v546 = vsel %vm500, %v533, %v545
          %v547 = vsel %vm502, %v540, %v546
          %v549 = vadd.f32 %v508, %v547
          %550 = vst [vmem:[%s507] sm:$0xf] %v549
          %s551 = scalar_lea.vmem [#allocation2], 8
          %v552 = vld [vmem:[%s551] sm:$0xf]
          %v553 = vmul.f32 %v457, %v457
          %v554 = vmul.f32 %v458, %v458
          %v555 = vmul.f32 %v459, %v459
          %v556 = vmul.f32 %v460, %v460
          %v557 = vsel %vm269, %v553, 0.0
          %v558 = vrot.slane %v557, 4
          %v559 = vadd.f32 %v557, %v558
          %v560 = vrot.slane %v559, 2
          %v561 = vadd.f32 %v559, %v560
          %v562 = vrot.slane %v561, 1
          %v563 = vadd.f32 %v561, %v562
          %v564 = vsel %vm269, %v554, 0.0
          %v565 = vrot.slane %v564, 4
          %v566 = vadd.f32 %v564, %v565
          %v567 = vrot.slane %v566, 2
          %v568 = vadd.f32 %v566, %v567
          %v569 = vrot.slane %v568, 1
          %v570 = vadd.f32 %v568, %v569
          %v571 = vsel %vm269, %v555, 0.0
          %v572 = vrot.slane %v571, 4
          %v573 = vadd.f32 %v571, %v572
          %v574 = vrot.slane %v573, 2
          %v575 = vadd.f32 %v573, %v574
          %v576 = vrot.slane %v575, 1
          %v577 = vadd.f32 %v575, %v576
          %v578 = vsel %vm269, %v556, 0.0
          %v579 = vrot.slane %v578, 4
          %v580 = vadd.f32 %v578, %v579
          %v581 = vrot.slane %v580, 2
          %v582 = vadd.f32 %v580, %v581
          %v583 = vrot.slane %v582, 1
          %v584 = vadd.f32 %v582, %v583
          %v589 = vsel %vm498, %v570, %v563
          %v590 = vsel %vm500, %v577, %v589
          %v591 = vsel %vm502, %v584, %v590
          %v593 = vadd.f32 %v552, %v591
          %594 = vst [vmem:[%s551] sm:$0xf] %v593
        $region48: #{tpu_custom_call.1} parent=27 // pred_fallthru
          _
        // Predicated region
        $region49: #{tpu_custom_call.1} parent=27 // pred_check
          %p595 = pneg %p254
        $region50: #{tpu_custom_call.1} parent=27 // pred_check_branch
          %597 = sbr.rel (%p595) target = $region52
        $region51: #{tpu_custom_call.1} parent=27 // pred_region
          %v598 = vld [vmem:[#allocation2] sm:$0xf]
          %v599 = vld [vmem:[#allocation2 + $0x4] sm:$0xf]
          %v600 = vld [vmem:[#allocation2 + $0x8] sm:$0xf]
          %601 = vst [vmem:[%s246] sm:$0xf] %v598
          %602 = vst [vmem:[%s246 + $0x4] sm:$0xf] %v599
          %603 = vst [vmem:[%s246 + $0x8] sm:$0xf] %v600
        $region52: #{tpu_custom_call.1} parent=27 // pred_fallthru
          _
        %s604 = sand.u32 %s119, 1
        %s605 = scalar_lea.sflag [#allocation5], %s604
        %s606 = sand.u32 %s119, 1
        %s607 = smul.addr %s606, 12
        %s608 = scalar_lea.vmem [#allocation8], %s607
        // Predicated region
        $region53: #{tpu_custom_call.1} parent=27 // pred_check
          %p609 = pneg %p129
        $region54: #{tpu_custom_call.1} parent=27 // pred_check_branch
          %611 = sbr.rel (%p609) target = $region56
        $region55: #{tpu_custom_call.1} parent=27 // pred_region
          %s613 = ssub.s32 192, 192
          %614 = vsyncadd %s605, %s613
          %s615 = smul.addr %s28, 3
          %s616 = smul.addr %s27, 3
          %s617 = sadd.s32 %s615, %s616
          %s618 = smul.addr %s617, 64
          %s619 = scalar_lea.hbm %s2, %s618
          %s620 = sshll.u32 %s608, 4
          %s621 = int_to_ptr.vmem [resolvable:$true] %s620
          %626 = dma.vmem_to_hbm [thread:$0]  %s621, 192, %s619, %s605, 64, 64, 4
        $region56: #{tpu_custom_call.1} parent=27 // pred_fallthru
          _
      $region28: #{tpu_custom_call.1} parent=5 // pred_fallthru
        _
      %p627 = scmp.le.s32.totalorder 2, %s17
      // Predicated region
      $region57: #{tpu_custom_call.1} parent=5 // pred_check
        %p628 = pneg %p627
      $region58: #{tpu_custom_call.1} parent=5 // pred_check_branch
        %630 = sbr.rel (%p628) target = $region60
      $region59: #{tpu_custom_call.1} parent=5 // pred_region
        %s631 = ssub.s32 %s17, 2
        // Predicated region
        $region61: #{tpu_custom_call.1} parent=59 // pred_check
          %p632 = pneg %p135
        $region62: #{tpu_custom_call.1} parent=59 // pred_check_branch
          %634 = sbr.rel (%p632) target = $region64
        $region63: #{tpu_custom_call.1} parent=59 // pred_region
          %s635 = sand.u32 %s120, 1
          %s636 = scalar_lea.sflag [#allocation5], %s635
          %s637 = sand.u32 %s120, 1
          %s638 = smul.addr %s637, 12
          %s639 = scalar_lea.vmem [#allocation8], %s638
          %640 = dma.done %s636, 192
        $region64: #{tpu_custom_call.1} parent=59 // pred_fallthru
          _
      $region60: #{tpu_custom_call.1} parent=5 // pred_fallthru
        _
    $region6: #{tpu_custom_call.1} parent=1 // loop_footer
      %s21 = sadd.s32 1, %s17
    $region7: #{tpu_custom_call.1} parent=1 // loop_footer_branch
      %16 = sbr.rel target = $region3
    $region8: #{tpu_custom_call.1} parent=1 // loop_exit
      _
    %641 = vsyncpa [#allocation4], 1
    %s642 = scalar_lea.sflag [#allocation4], 1
    %643 = vsyncpa %s642, 1
    %644 = vsyncpa [#allocation7], 1
    %s645 = scalar_lea.sflag [#allocation7], 1
    %646 = vsyncpa %s645, 1
    %647 = vsyncpa [#allocation5], 1
    %s648 = scalar_lea.sflag [#allocation5], 1
    %649 = vsyncpa %s648, 1

</llo_original>
